<compile_context>
chip_gen: v6e
topology: v6e:2x2x1
jax: 0.10.0
libtpu: 0.0.40
codegen_flags: <defaults>
</compile_context>

<pallas_src>
import jax
import jax.numpy as jnp
from jax.experimental import pallas as pl
from jax.experimental.pallas import tpu as pltpu

_EPS = 1e-5


# --------------------------- single-pass kernels ----------------------------


def _ln_kernel_bias(x_ref, w_ref, b_ref, o_ref):
    # x_ref: (tm, H) rows; w_ref/b_ref: (1, H) params broadcast over rows.
    x = x_ref[...].astype(jnp.float32)
    mean = jnp.mean(x, axis=-1, keepdims=True)
    xc = x - mean                                   # two-pass (centered) variance
    var = jnp.mean(xc * xc, axis=-1, keepdims=True)
    scale = jax.lax.rsqrt(var + _EPS) * w_ref[...].astype(jnp.float32)  # EUP rsqrt
    o_ref[...] = (xc * scale + b_ref[...].astype(jnp.float32)).astype(o_ref.dtype)


def _ln_kernel_nobias(x_ref, w_ref, o_ref):
    x = x_ref[...].astype(jnp.float32)
    mean = jnp.mean(x, axis=-1, keepdims=True)
    xc = x - mean
    var = jnp.mean(xc * xc, axis=-1, keepdims=True)
    scale = jax.lax.rsqrt(var + _EPS) * w_ref[...].astype(jnp.float32)
    o_ref[...] = (xc * scale).astype(o_ref.dtype)


# --------------------------- H-chunked fallback kernels ---------------------


def _make_stats_kernel(H, th):
    """Pass 1: per-row mean / rstd, accumulated over H-chunks (axis 1 of grid)."""
    inv_h = 1.0 / float(H)
    needs_mask = (H % th) != 0

    def kernel(x_ref, mean_ref, rstd_ref):
        j = pl.program_id(1)

        @pl.when(j == 0)
        def _():
            mean_ref[...] = jnp.zeros_like(mean_ref)   # running sum
            rstd_ref[...] = jnp.zeros_like(rstd_ref)   # running sum of squares

        x = x_ref[...].astype(jnp.float32)
        if needs_mask:  # tail chunk: zero out columns past H so sums stay exact
            col = jax.lax.broadcasted_iota(jnp.int32, x.shape, 1)
            x = jnp.where(j * th + col < H, x, 0.0)
        mean_ref[...] += jnp.sum(x, axis=-1, keepdims=True)
        rstd_ref[...] += jnp.sum(x * x, axis=-1, keepdims=True)

        @pl.when(j == pl.num_programs(1) - 1)
        def _():
            # TODO(synk): one-pass E[x^2]-E[x]^2 loses precision when |mean|>>std;
            # acceptable for LayerNorm-scale activations, f32 accumulation kept.
            m = mean_ref[...] * inv_h
            var = jnp.maximum(rstd_ref[...] * inv_h - m * m, 0.0)
            mean_ref[...] = m
            rstd_ref[...] = jax.lax.rsqrt(var + _EPS)

    return kernel


def _ln_apply_bias(x_ref, mean_ref, rstd_ref, w_ref, b_ref, o_ref):
    x = x_ref[...].astype(jnp.float32)
    scale = rstd_ref[...] * w_ref[...].astype(jnp.float32)
    o_ref[...] = ((x - mean_ref[...]) * scale
                  + b_ref[...].astype(jnp.float32)).astype(o_ref.dtype)


def _ln_apply_nobias(x_ref, mean_ref, rstd_ref, w_ref, o_ref):
    x = x_ref[...].astype(jnp.float32)
    scale = rstd_ref[...] * w_ref[...].astype(jnp.float32)
    o_ref[...] = ((x - mean_ref[...]) * scale).astype(o_ref.dtype)


# ------------------------------- helpers ------------------------------------


def _round_up(x, m):
    return ((x + m - 1) // m) * m


def _sublane_multiple(dtype):
    itemsize = jnp.dtype(dtype).itemsize
    if itemsize >= 4:
        return 8
    if itemsize == 2:
        return 16
    return 32


def _vmem_capacity_bytes():
    # Per-generation physical VMEM (v5e/v6e: 128 MiB; v7x: 64 MiB per TC).
    try:
        info = pltpu.get_tpu_info()
        cap = getattr(info, "vmem_capacity_bytes", None)
        if cap:
            return int(cap)
    except Exception:
        pass
    # Generation-aware fallback: don't silently halve the budget on v5e/v6e.
    try:
        kind = jax.devices()[0].device_kind.lower()
        if "v7" in kind:
            return 64 * 1024 * 1024
        if "v5" in kind or "v6" in kind:
            return 128 * 1024 * 1024
    except Exception:
        pass
    return 64 * 1024 * 1024  # unknown device: conservative


def _pick_row_tile(R, H, itemsize, sublane, budget):
    """Largest row tile that fits the VMEM budget, capped by bytes (not rows)."""
    # per-row bytes: 2x-buffered input + 2x-buffered output + ~2 f32 temporaries
    per_row = H * (4 * itemsize + 8)
    tm = budget // max(per_row, 1)
    # Cap the input tile itself at ~8 MiB: DMA amortization is already >99%
    # there; bigger tiles only eat pipeline / regalloc headroom.
    tm = min(tm, (8 * 1024 * 1024) // max(H * itemsize, 1))
    # Guarantee >=2 grid steps so ("parallel",) actually shards across the two
    # v7x TensorCores; the extra grid step is negligible on v5e/v6e (1 TC).
    tm = min(tm, _round_up(pl.cdiv(R, 2), sublane))
    return max(sublane, (tm // sublane) * sublane)


# ------------------------------- wrappers ------------------------------------


def _layer_norm_single_pass(x2, w2, b2, R, H, itemsize, sublane, vmem_cap, budget):
    tm = _pick_row_tile(R, H, itemsize, sublane, budget)
    grid = (pl.cdiv(R, tm),)  # boundary block handles R % tm; OOB writes dropped

    # Scoped-VMEM sizing: 2x-buffered in/out tiles + f32 working set + params,
    # 25% margin; small floor covers (8,128) tile padding for tiny H.
    vmem_needed = int((4 * tm * H * itemsize + 3 * tm * H * 4 + 4 * H * 4) * 1.25)
    vmem_limit = min(max(vmem_needed, 4 * 1024 * 1024), int(vmem_cap * 0.9))

    x_spec = pl.BlockSpec((tm, H), lambda i: (i, 0))
    p_spec = pl.BlockSpec((1, H), lambda i: (0, 0))  # constant index: no re-DMA
    out_spec = pl.BlockSpec((tm, H), lambda i: (i, 0))
    # TODO(synk): for H < 128 the stores are masked (vst.msk); a lane-packing
    # reshape (128//H logical rows per lane block) would make them lane-dense.

    compiler_params = pltpu.CompilerParams(
        dimension_semantics=("parallel",),
        vmem_limit_bytes=vmem_limit,
    )

    if b2 is not None:
        kernel, in_specs, args = _ln_kernel_bias, [x_spec, p_spec, p_spec], (x2, w2, b2)
    else:
        kernel, in_specs, args = _ln_kernel_nobias, [x_spec, p_spec], (x2, w2)

    return pl.pallas_call(
        kernel,
        out_shape=jax.ShapeDtypeStruct((R, H), x2.dtype),
        grid_spec=pltpu.PrefetchScalarGridSpec(
            num_scalar_prefetch=0,
            grid=grid,
            in_specs=in_specs,
            out_specs=out_spec,
        ),
        compiler_params=compiler_params,
    )(*args)


def _layer_norm_h_chunked(x2, w2, b2, R, H, itemsize, sublane, vmem_cap, budget,
                          h_chunk):
    # Modest row tile; column chunk as wide as the budget allows (multiple of 128).
    tm = max(sublane, min(_round_up(R, sublane), 8 * sublane))
    per_col = tm * (4 * itemsize + 8)
    th = (budget // max(per_col, 1)) // 128 * 128
    th = max(128, min(th, _round_up(H, 128)))
    if h_chunk is not None:  # test/override hook
        th = max(128, min(_round_up(int(h_chunk), 128), _round_up(H, 128)))

    nr = pl.cdiv(R, tm)
    nh = pl.cdiv(H, th)

    vmem_needed = int((4 * tm * th * itemsize + 3 * tm * th * 4
                       + 8 * tm * 4 + 4 * th * 4) * 1.25)
    vmem_limit = min(max(vmem_needed, 4 * 1024 * 1024), int(vmem_cap * 0.9))

    x_spec = pl.BlockSpec((tm, th), lambda i, j: (i, j))
    stat_spec = pl.BlockSpec((tm, 1), lambda i, j: (i, 0))

    # Pass 1: per-row mean / rstd (f32), chunk axis is a reduction -> "arbitrary".
    mean, rstd = pl.pallas_call(
        _make_stats_kernel(H, th),
        out_shape=(jax.ShapeDtypeStruct((R, 1), jnp.float32),
                   jax.ShapeDtypeStruct((R, 1), jnp.float32)),
        grid_spec=pltpu.PrefetchScalarGridSpec(
            num_scalar_prefetch=0,
            grid=(nr, nh),
            in_specs=[x_spec],
            out_specs=[stat_spec, stat_spec],
        ),
        compiler_params=pltpu.CompilerParams(
            dimension_semantics=("parallel", "arbitrary"),
            vmem_limit_bytes=vmem_limit,
        ),
    )(x2)

    # Pass 2: normalize + affine, purely elementwise per (row tile, col chunk).
    p_spec = pl.BlockSpec((1, th), lambda i, j: (0, j))
    out_spec = pl.BlockSpec((tm, th), lambda i, j: (i, j))

    if b2 is not None:
        kernel = _ln_apply_bias
        in_specs = [x_spec, stat_spec, stat_spec, p_spec, p_spec]
        args = (x2, mean, rstd, w2, b2)
    else:
        kernel = _ln_apply_nobias
        in_specs = [x_spec, stat_spec, stat_spec, p_spec]
        args = (x2, mean, rstd, w2)

    return pl.pallas_call(
        kernel,
        out_shape=jax.ShapeDtypeStruct((R, H), x2.dtype),
        grid_spec=pltpu.PrefetchScalarGridSpec(
            num_scalar_prefetch=0,
            grid=(nr, nh),
            in_specs=in_specs,
            out_specs=out_spec,
        ),
        compiler_params=pltpu.CompilerParams(
            dimension_semantics=("parallel", "parallel"),
            vmem_limit_bytes=vmem_limit,
        ),
    )(*args)


def layer_norm(x, weight, bias=None, *, h_chunk=None):
    """LayerNorm over the last dimension of x (any leading dims), eps=1e-5."""
    orig_shape = x.shape
    H = orig_shape[-1]
    x2 = x.reshape(-1, H)
    R = x2.shape[0]

    itemsize = jnp.dtype(x.dtype).itemsize
    sublane = _sublane_multiple(x.dtype)
    vmem_cap = _vmem_capacity_bytes()
    budget = int(vmem_cap * 0.5)

    w2 = weight.reshape(1, H)
    b2 = bias.reshape(1, H) if bias is not None else None

    # Single pass whenever even a sublane-height full-H tile fits the budget.
    per_row = H * (4 * itemsize + 8)
    single_pass_ok = h_chunk is None and (budget // max(per_row, 1)) >= sublane

    if single_pass_ok:
        out = _layer_norm_single_pass(x2, w2, b2, R, H, itemsize, sublane,
                                      vmem_cap, budget)
    else:
        out = _layer_norm_h_chunked(x2, w2, b2, R, H, itemsize, sublane,
                                    vmem_cap, budget, h_chunk)
    return out.reshape(orig_shape)


def layer_norm_ref(x, weight, bias=None, eps=1e-5):
    x32 = x.astype(jnp.float32)
    mean = jnp.mean(x32, axis=-1, keepdims=True)
    var = jnp.mean((x32 - mean) ** 2, axis=-1, keepdims=True)
    y = (x32 - mean) * jax.lax.rsqrt(var + eps)
    y = y * weight.astype(jnp.float32)
    if bias is not None:
        y = y + bias.astype(jnp.float32)
    return y.astype(x.dtype)


if __name__ == "__main__":
    key = jax.random.PRNGKey(0)

    # Case 1: f32, with bias (matches nn.Parameter(ones/zeros) init), H < 128.
    B, T, H = 2, 8, 32
    x = jax.random.normal(key, (B, T, H), dtype=jnp.float32)
    weight = jnp.ones((H,), dtype=jnp.float32)
    bias = jnp.zeros((H,), dtype=jnp.float32)

    out = jax.block_until_ready(layer_norm(x, weight, bias))
    ref = layer_norm_ref(x, weight, bias)
    assert out.shape == x.shape and out.dtype == x.dtype
    assert jnp.allclose(out, ref, atol=1e-5, rtol=1e-5)

    # Case 2: bf16, bias=None, non-divisible row count (exercises boundary block).
    k2 = jax.random.PRNGKey(0)
    B2, T2, H2 = 3, 7, 128
    x2 = jax.random.normal(k2, (B2, T2, H2), dtype=jnp.bfloat16)
    w2 = jnp.ones((H2,), dtype=jnp.bfloat16)

    out2 = jax.block_until_ready(layer_norm(x2, w2, None))
    ref2 = layer_norm_ref(x2, w2, None)
    assert out2.shape == x2.shape and out2.dtype == x2.dtype
    assert jnp.allclose(out2.astype(jnp.float32), ref2.astype(jnp.float32),
                        atol=2e-2, rtol=2e-2)

    # Case 3: force the H-chunked fallback (partial H chunk + partial row block)
    # at a small shape so the large-H path is validated on-device.
    k3 = jax.random.PRNGKey(0)
    B3, T3, H3 = 2, 11, 384
    x3 = jax.random.normal(k3, (B3, T3, H3), dtype=jnp.float32)
    w3 = jnp.ones((H3,), dtype=jnp.float32) * 1.5
    b3 = jnp.full((H3,), 0.25, dtype=jnp.float32)

    out3 = jax.block_until_ready(layer_norm(x3, w3, b3, h_chunk=256))
    ref3 = layer_norm_ref(x3, w3, b3)
    assert out3.shape == x3.shape and out3.dtype == x3.dtype
    assert jnp.allclose(out3, ref3, atol=1e-4, rtol=1e-4)

    print("KERNEL_OK")
</pallas_src>

<mosaic_0001>
module attributes {stable_mosaic.version = 11 : i64} {
  func.func @_ln_kernel_bias(%arg0: i32, %arg1: memref<8x32xf32, #tpu.memory_space<vmem>>, %arg2: memref<1x32xf32, #tpu.memory_space<vmem>>, %arg3: memref<1x32xf32, #tpu.memory_space<vmem>>, %arg4: memref<8x32xf32, #tpu.memory_space<vmem>>) attributes {dimension_semantics = [#tpu.dimension_semantics<parallel>], iteration_bounds = array<i64: 2>, scalar_prefetch = 0 : i64, scratch_operands = 0 : i64, tpu.core_type = #tpu.core_type<tc>, window_params = [{transform_indices = @transform_0, window_bounds = array<i64: 8, 32>}, {pipeline_mode = #tpu.pipeline_mode<synchronous>, transform_indices = @transform_1, window_bounds = array<i64: 1, 32>}, {pipeline_mode = #tpu.pipeline_mode<synchronous>, transform_indices = @transform_2, window_bounds = array<i64: 1, 32>}, {transform_indices = @transform_3, window_bounds = array<i64: 8, 32>}]} {
    %c0 = arith.constant 0 : index
    %c0_0 = arith.constant 0 : index
    %0 = vector.load %arg1[%c0, %c0_0] : memref<8x32xf32, #tpu.memory_space<vmem>>, vector<8x32xf32>
    %cst = arith.constant dense<0.000000e+00> : vector<8xf32>
    %1 = vector.multi_reduction <add>, %0, %cst [1] : vector<8x32xf32> to vector<8xf32>
    %2 = vector.shape_cast %1 : vector<8xf32> to vector<8x1xf32>
    %cst_1 = arith.constant 3.200000e+01 : f32
    %3 = vector.broadcast %cst_1 : f32 to vector<8x1xf32>
    %4 = arith.divf %2, %3 : vector<8x1xf32>
    %5 = vector.broadcast %4 : vector<8x1xf32> to vector<8x32xf32>
    %6 = arith.subf %0, %5 : vector<8x32xf32>
    %7 = arith.mulf %6, %6 : vector<8x32xf32>
    %cst_2 = arith.constant dense<0.000000e+00> : vector<8xf32>
    %8 = vector.multi_reduction <add>, %7, %cst_2 [1] : vector<8x32xf32> to vector<8xf32>
    %9 = vector.shape_cast %8 : vector<8xf32> to vector<8x1xf32>
    %cst_3 = arith.constant 3.200000e+01 : f32
    %10 = vector.broadcast %cst_3 : f32 to vector<8x1xf32>
    %11 = arith.divf %9, %10 : vector<8x1xf32>
    %cst_4 = arith.constant 9.99999974E-6 : f32
    %12 = vector.broadcast %cst_4 : f32 to vector<8x1xf32>
    %13 = arith.addf %11, %12 : vector<8x1xf32>
    %14 = math.rsqrt %13 : vector<8x1xf32>
    %c0_5 = arith.constant 0 : index
    %c0_6 = arith.constant 0 : index
    %15 = vector.load %arg2[%c0_5, %c0_6] : memref<1x32xf32, #tpu.memory_space<vmem>>, vector<1x32xf32>
    %16 = vector.broadcast %14 : vector<8x1xf32> to vector<8x32xf32>
    %17 = vector.broadcast %15 : vector<1x32xf32> to vector<8x32xf32>
    %18 = arith.mulf %16, %17 : vector<8x32xf32>
    %19 = arith.mulf %6, %18 : vector<8x32xf32>
    %c0_7 = arith.constant 0 : index
    %c0_8 = arith.constant 0 : index
    %20 = vector.load %arg3[%c0_7, %c0_8] : memref<1x32xf32, #tpu.memory_space<vmem>>, vector<1x32xf32>
    %21 = vector.broadcast %20 : vector<1x32xf32> to vector<8x32xf32>
    %22 = arith.addf %19, %21 : vector<8x32xf32>
    %c0_9 = arith.constant 0 : index
    %c0_10 = arith.constant 0 : index
    %23 = vector.load %arg4[%c0_9, %c0_10] : memref<8x32xf32, #tpu.memory_space<vmem>>, vector<8x32xf32>
    tpu.vector_store %arg4[%c0_9, %c0_10], %22 {strides = array<i32>} : memref<8x32xf32, #tpu.memory_space<vmem>>, vector<8x32xf32>,
    return
  }
  func.func @transform_0(%arg0: i32) -> (i32, i32) {
    %c0_i32 = arith.constant 0 : i32
    %c0_i32_0 = arith.constant 0 : i32
    return %arg0, %c0_i32 : i32, i32
  }
  func.func @transform_1(%arg0: i32) -> (i32, i32) {
    %c0_i32 = arith.constant 0 : i32
    %c0_i32_0 = arith.constant 0 : i32
    %c0_i32_1 = arith.constant 0 : i32
    return %c0_i32, %c0_i32_0 : i32, i32
  }
  func.func @transform_2(%arg0: i32) -> (i32, i32) {
    %c0_i32 = arith.constant 0 : i32
    %c0_i32_0 = arith.constant 0 : i32
    %c0_i32_1 = arith.constant 0 : i32
    return %c0_i32, %c0_i32_0 : i32, i32
  }
  func.func @transform_3(%arg0: i32) -> (i32, i32) {
    %c0_i32 = arith.constant 0 : i32
    %c0_i32_0 = arith.constant 0 : i32
    return %arg0, %c0_i32 : i32, i32
  }
}

</mosaic_0001>

<llo_original>
// kernel: tpu_custom_call.1
$region0: #{tpu_custom_call.1}
  #allocation0 [shape = 'u32[]', space=smem, size = 0x4, offset = 0x4, fixed_abs, tag = 'smem constant byte address 0x4 - core index']
  #allocation1 [shape = 'u32[144,128]{1,0:T(1,128)}', space=vmem, size = 0x12000, scoped, tag = 'internal scratch']
  %s0 = inlined_call_operand.hbm [shape: f32[16,32], index: 0, kind: input, shape index: {}]
  %s1 = inlined_call_operand.vmem [shape: f32[1,32], index: 1, kind: input, shape index: {}]
  %s2 = inlined_call_operand.vmem [shape: f32[1,32], index: 2, kind: input, shape index: {}]
  %s3 = inlined_call_operand.hbm [shape: f32[16,32], index: 3, kind: output, shape index: {}]
  %s4 = sld [smem:[#allocation0]]
  $region49: #{tpu_custom_call.1} parent=0
    _
  %s6 = ssub.s32 1, %s4
  %s7 = scalar_select 0, %s6, %s4
  $region1: #{tpu_custom_call.1} parent=0
    #allocation2 [shape = 'u8[8192]{0}', space=vmem, size = 0x2000, scoped, tag = 'input window, operand 0']
    #allocation3 [shape = 's32[2]{0}', space=sflag, size = 0x8, scoped, tag = 'scoped memory for tpu_custom_call.1']
    #allocation4 [shape = 's32[2]{0}', space=sflag, size = 0x8, scoped, tag = 'scoped memory for tpu_custom_call.1']
    #allocation5 [shape = 'u8[8192]{0}', space=vmem, size = 0x2000, scoped, tag = 'output window, operand 0']
    %8 = vsyncpa [#allocation3], 0
    %s9 = scalar_lea.sflag [#allocation3], 1
    %10 = vsyncpa %s9, 0
    %11 = vsyncpa [#allocation4], 0
    %s12 = scalar_lea.sflag [#allocation4], 1
    %13 = vsyncpa %s12, 0
    loop: start=0, step=1, limit=4
    $region2: #{tpu_custom_call.1} parent=1 // loop_pre_header
      _
    $region3: #{tpu_custom_call.1} parent=1 // loop_header
      %s15 = sphi 0, %s19
      %p16 = scmp.ge.s32.totalorder %s15, 4
      %s25 = sphi 0, %s27
      %s28 = sphi 0, %s25
      %s29 = sphi 0, %s28
      %s45 = sphi 0, %s29
      %s49 = sphi 0, %s49
      %s51 = sphi 0, %s49
      %s52 = sphi 0, %s51
      %s66 = sphi 0, %s52
      %s70 = sphi 0, %s70
      %s72 = sphi 0, %s70
      %s73 = sphi 0, %s72
      %s87 = sphi 0, %s73
      %s93 = sphi 0, %s95
      %s96 = sphi 0, %s93
      %s97 = sphi 0, %s96
      %s113 = sphi 0, %s97
    $region4: #{tpu_custom_call.1} parent=1 // loop_header_branch
      %18 = sbr.rel (%p16) target = $region8
    $region5: #{tpu_custom_call.1} parent=1 // loop_body
      %s20 = ssub.s32 %s15, 1
      %s21 = ssub.s32 %s15, 2
      %s22 = sadd.s32 %s15, 1
      %s23 = ssub.s32 %s15, %s22
      %p24 = scmp.eq.s32.totalorder %s23, 0
      %s26 = sadd.s32 %s25, 1
      %s27 = scalar_select %p24, %s25, %s26
      %p30 = pneg %p24
      %p31 = scmp.eq.s32.totalorder %s15, 1
      %p32 = por %p30, %p31
      %p33 = scmp.ne.s32.totalorder %s25, %s28
      %p34 = scmp.eq.s32.totalorder %s15, 0
      %p35 = por %p33, %p34
      %p36 = scmp.ne.s32.totalorder %s25, %s28
      %p37 = scmp.eq.s32.totalorder %s20, 1
      %p38 = por %p36, %p37
      %p39 = scmp.ne.s32.totalorder %s28, %s29
      %p40 = scmp.eq.s32.totalorder %s20, 0
      %p41 = por %p39, %p40
      %p42 = scmp.ne.s32.totalorder %s28, %s29
      %p43 = scmp.eq.s32.totalorder %s21, 1
      %p44 = por %p42, %p43
      %p46 = scmp.ne.s32.totalorder %s29, %s45
      %p47 = scmp.eq.s32.totalorder %s21, 0
      %p48 = por %p46, %p47
      %s50 = sadd.s32 %s49, 1
      %p53 = scmp.eq.s32.totalorder %s15, 1
      %p54 = scmp.ne.s32.totalorder %s49, %s51
      %p55 = scmp.eq.s32.totalorder %s15, 0
      %p56 = por %p54, %p55
      %p57 = scmp.ne.s32.totalorder %s49, %s51
      %p58 = scmp.eq.s32.totalorder %s20, 1
      %p59 = por %p57, %p58
      %p60 = scmp.ne.s32.totalorder %s51, %s52
      %p61 = scmp.eq.s32.totalorder %s20, 0
      %p62 = por %p60, %p61
      %p63 = scmp.ne.s32.totalorder %s51, %s52
      %p64 = scmp.eq.s32.totalorder %s21, 1
      %p65 = por %p63, %p64
      %p67 = scmp.ne.s32.totalorder %s52, %s66
      %p68 = scmp.eq.s32.totalorder %s21, 0
      %p69 = por %p67, %p68
      %s71 = sadd.s32 %s70, 1
      %p74 = scmp.eq.s32.totalorder %s15, 1
      %p75 = scmp.ne.s32.totalorder %s70, %s72
      %p76 = scmp.eq.s32.totalorder %s15, 0
      %p77 = por %p75, %p76
      %p78 = scmp.ne.s32.totalorder %s70, %s72
      %p79 = scmp.eq.s32.totalorder %s20, 1
      %p80 = por %p78, %p79
      %p81 = scmp.ne.s32.totalorder %s72, %s73
      %p82 = scmp.eq.s32.totalorder %s20, 0
      %p83 = por %p81, %p82
      %p84 = scmp.ne.s32.totalorder %s72, %s73
      %p85 = scmp.eq.s32.totalorder %s21, 1
      %p86 = por %p84, %p85
      %p88 = scmp.ne.s32.totalorder %s73, %s87
      %p89 = scmp.eq.s32.totalorder %s21, 0
      %p90 = por %p88, %p89
      %s91 = ssub.s32 %s15, %s22
      %p92 = scmp.eq.s32.totalorder %s91, 0
      %s94 = sadd.s32 %s93, 1
      %s95 = scalar_select %p92, %s93, %s94
      %p98 = pneg %p92
      %p99 = scmp.eq.s32.totalorder %s15, 1
      %p100 = por %p98, %p99
      %p101 = scmp.ne.s32.totalorder %s93, %s96
      %p102 = scmp.eq.s32.totalorder %s15, 0
      %p103 = por %p101, %p102
      %p104 = scmp.ne.s32.totalorder %s93, %s96
      %p105 = scmp.eq.s32.totalorder %s20, 1
      %p106 = por %p104, %p105
      %p107 = scmp.ne.s32.totalorder %s96, %s97
      %p108 = scmp.eq.s32.totalorder %s20, 0
      %p109 = por %p107, %p108
      %p110 = scmp.ne.s32.totalorder %s96, %s97
      %p111 = scmp.eq.s32.totalorder %s21, 1
      %p112 = por %p110, %p111
      %p114 = scmp.ne.s32.totalorder %s97, %s113
      %p115 = scmp.eq.s32.totalorder %s21, 0
      %p116 = por %p114, %p115
      %p117 = scmp.le.s32.totalorder 1, %s15
      %p118 = scmp.lt.s32.totalorder %s15, 3
      %p119 = pnand %p117, %p118
      %p120 = pneg %p119
      // Predicated region
      $region9: #{tpu_custom_call.1} parent=5 // pred_check
        _
      $region10: #{tpu_custom_call.1} parent=5 // pred_check_branch
        %122 = sbr.rel (%p119) target = $region12
      $region11: #{tpu_custom_call.1} parent=5 // pred_region
        %s123 = ssub.s32 %s15, 1
        // Predicated region
        $region13: #{tpu_custom_call.1} parent=11 // pred_check
          %p124 = pneg %p62
        $region14: #{tpu_custom_call.1} parent=11 // pred_check_branch
          %126 = sbr.rel (%p124) target = $region16
        $region15: #{tpu_custom_call.1} parent=11 // pred_region
          _
        $region16: #{tpu_custom_call.1} parent=11 // pred_fallthru
          _
        // Predicated region
        $region17: #{tpu_custom_call.1} parent=11 // pred_check
          %p127 = pneg %p83
        $region18: #{tpu_custom_call.1} parent=11 // pred_check_branch
          %129 = sbr.rel (%p127) target = $region20
        $region19: #{tpu_custom_call.1} parent=11 // pred_region
          _
        $region20: #{tpu_custom_call.1} parent=11 // pred_fallthru
          _
      $region12: #{tpu_custom_call.1} parent=5 // pred_fallthru
        _
      %p130 = scmp.lt.s32.totalorder %s15, 2
      // Predicated region
      $region21: #{tpu_custom_call.1} parent=5 // pred_check
        %p131 = pneg %p130
      $region22: #{tpu_custom_call.1} parent=5 // pred_check_branch
        %133 = sbr.rel (%p131) target = $region24
      $region23: #{tpu_custom_call.1} parent=5 // pred_region
        // Predicated region
        $region25: #{tpu_custom_call.1} parent=23 // pred_check
          %p134 = pneg %p35
        $region26: #{tpu_custom_call.1} parent=23 // pred_check_branch
          %136 = sbr.rel (%p134) target = $region28
        $region27: #{tpu_custom_call.1} parent=23 // pred_region
          %s137 = sand.u32 %s25, 1
          %s138 = scalar_lea.sflag [#allocation3], %s137
          %s139 = sand.u32 %s25, 1
          %s140 = smul.addr %s139, 8
          %s141 = scalar_lea.vmem [#allocation2], %s140
          %s143 = ssub.s32 128, 128
          %144 = vsyncadd %s138, %s143
          %s145 = smul.addr %s15, 128
          %s146 = scalar_lea.hbm %s0, %s145
          %s148 = sshll.u32 %s141, 4
          %s149 = int_to_ptr.vmem [resolvable:$true] %s148
          %151 = dma.hbm_to_vmem [thread:$0]  %s146, 128, %s149, %s138
        $region28: #{tpu_custom_call.1} parent=23 // pred_fallthru
          _
      $region24: #{tpu_custom_call.1} parent=5 // pred_fallthru
        _
      %p152 = scmp.le.s32.totalorder 1, %s15
      %p153 = scmp.lt.s32.totalorder %s15, 3
      %p154 = pnand %p152, %p153
      %p155 = pneg %p154
      // Predicated region
      $region29: #{tpu_custom_call.1} parent=5 // pred_check
        _
      $region30: #{tpu_custom_call.1} parent=5 // pred_check_branch
        %157 = sbr.rel (%p154) target = $region32
      $region31: #{tpu_custom_call.1} parent=5 // pred_region
        %s158 = ssub.s32 %s15, 1
        %s159 = sand.u32 %s28, 1
        %s160 = scalar_lea.sflag [#allocation3], %s159
        %s161 = sand.u32 %s28, 1
        %s162 = smul.addr %s161, 8
        %s163 = scalar_lea.vmem [#allocation2], %s162
        // Predicated region
        $region33: #{tpu_custom_call.1} parent=31 // pred_check
          %p164 = pneg %p41
        $region34: #{tpu_custom_call.1} parent=31 // pred_check_branch
          %166 = sbr.rel (%p164) target = $region36
        $region35: #{tpu_custom_call.1} parent=31 // pred_region
          %167 = dma.done %s160, 128
        $region36: #{tpu_custom_call.1} parent=31 // pred_fallthru
          _
        %s168 = sand.u32 %s28, 1
        %s169 = scalar_lea.sflag [#allocation3], %s168
        %s170 = sand.u32 %s28, 1
        %s171 = smul.addr %s170, 8
        %s172 = scalar_lea.vmem [#allocation2], %s171
        %p173 = pneg %p41
        %p174 = pneg %p38
        %p175 = pneg %p62
        %p176 = pneg %p59
        %p177 = pneg %p83
        %p178 = pneg %p80
        %p179 = pneg %p109
        %p180 = pneg %p106
        %s181 = sand.u32 %s96, 1
        %s182 = scalar_lea.sflag [#allocation4], %s181
        %s183 = sand.u32 %s96, 1
        %s184 = smul.addr %s183, 8
        %s185 = scalar_lea.vmem [#allocation5], %s184
        %v186 = vld [vmem:[%s163] sm:$0xff]
        %vm187 = vcmask 261120
        %v188 = vsel %vm187, %v186, 0.0
        %189 = vadd.xlane.f32.xlu0 %v188
        %v190 = vpop.xlane.xlu0 %189
        %v191 = vrcp.pop 32.0
        %v192 = vmul.f32 %v190, %v191
        %v193 = vsub.f32 %v186, %v192
        %v194 = vmul.f32 %v193, %v193
        %v195 = vsel %vm187, %v194, 0.0
        %196 = vadd.xlane.f32.xlu0 %v195
        %v197 = vpop.xlane.xlu0 %196
        %v198 = vmul.f32 %v197, %v191
        %v199 = vadd.f32 %v198, 1e-05
        %v200 = vrsqrt.pop %v199
        %v201 = vld [vmem:[%s1] sm:$0x1]
        %v203 = vlaneseq
        %v204 = vshrl.u32 %v203, 7
        %v205 = vsub.s32 0, %v204
        %v206 = vrot.slane %v201, %v205
        %v208 = vmul.f32 %v200, %v206
        %v209 = vmul.f32 %v193, %v208
        %v210 = vld [vmem:[%s2] sm:$0x1]
        %v212 = vlaneseq
        %v213 = vshrl.u32 %v212, 7
        %v214 = vsub.s32 0, %v213
        %v215 = vrot.slane %v210, %v214
        %v217 = vadd.f32 %v209, %v215
        %218 = vst.msk [vmem:[%s185] sm:$0xff] %vm187, %v217
        %s219 = sand.u32 %s96, 1
        %s220 = scalar_lea.sflag [#allocation4], %s219
        %s221 = sand.u32 %s96, 1
        %s222 = smul.addr %s221, 8
        %s223 = scalar_lea.vmem [#allocation5], %s222
        // Predicated region
        $region37: #{tpu_custom_call.1} parent=31 // pred_check
          %p224 = pneg %p106
        $region38: #{tpu_custom_call.1} parent=31 // pred_check_branch
          %226 = sbr.rel (%p224) target = $region40
        $region39: #{tpu_custom_call.1} parent=31 // pred_region
          %s228 = ssub.s32 128, 128
          %229 = vsyncadd %s220, %s228
          %s230 = smul.addr %s20, 128
          %s231 = scalar_lea.hbm %s3, %s230
          %s233 = sshll.u32 %s223, 4
          %s234 = int_to_ptr.vmem [resolvable:$true] %s233
          %236 = dma.vmem_to_hbm [thread:$0]  %s234, 128, %s231, %s220
        $region40: #{tpu_custom_call.1} parent=31 // pred_fallthru
          _
      $region32: #{tpu_custom_call.1} parent=5 // pred_fallthru
        _
      %p237 = scmp.le.s32.totalorder 2, %s15
      // Predicated region
      $region41: #{tpu_custom_call.1} parent=5 // pred_check
        %p238 = pneg %p237
      $region42: #{tpu_custom_call.1} parent=5 // pred_check_branch
        %240 = sbr.rel (%p238) target = $region44
      $region43: #{tpu_custom_call.1} parent=5 // pred_region
        %s241 = ssub.s32 %s15, 2
        // Predicated region
        $region45: #{tpu_custom_call.1} parent=43 // pred_check
          %p242 = pneg %p112
        $region46: #{tpu_custom_call.1} parent=43 // pred_check_branch
          %244 = sbr.rel (%p242) target = $region48
        $region47: #{tpu_custom_call.1} parent=43 // pred_region
          %s245 = sand.u32 %s97, 1
          %s246 = scalar_lea.sflag [#allocation4], %s245
          %s247 = sand.u32 %s97, 1
          %s248 = smul.addr %s247, 8
          %s249 = scalar_lea.vmem [#allocation5], %s248
          %250 = dma.done %s246, 128
        $region48: #{tpu_custom_call.1} parent=43 // pred_fallthru
          _
      $region44: #{tpu_custom_call.1} parent=5 // pred_fallthru
        _
    $region6: #{tpu_custom_call.1} parent=1 // loop_footer
      %s19 = sadd.s32 1, %s15
    $region7: #{tpu_custom_call.1} parent=1 // loop_footer_branch
      %14 = sbr.rel target = $region3
    $region8: #{tpu_custom_call.1} parent=1 // loop_exit
      _
    %251 = vsyncpa [#allocation3], 1
    %s252 = scalar_lea.sflag [#allocation3], 1
    %253 = vsyncpa %s252, 1
    %254 = vsyncpa [#allocation4], 1
    %s255 = scalar_lea.sflag [#allocation4], 1
    %256 = vsyncpa %s255, 1

</llo_original>
